<compile_context>
chip_gen: v7x
topology: tpu7x:2x2x1
jax: 0.10.0
libtpu: 0.0.40
codegen_flags: <defaults>
</compile_context>

<pallas_src>
import functools

import jax
import jax.numpy as jnp
from jax.experimental import pallas as pl
from jax.experimental.pallas import tpu as pltpu

LANE = 128
_FUSED_VMEM_BUDGET_BYTES = 36 * 1024 * 1024   # eligibility cap (v7x: 64 MiB VMEM)
_VMEM_LIMIT_BYTES = 48 * 1024 * 1024          # raised scoped VMEM limit


def _round_up(v, m):
    return (v + m - 1) // m * m


def _pad2(x, rows, cols):
    return jnp.pad(x, ((0, rows - x.shape[0]), (0, cols - x.shape[1])))


def _pick_tile(n_pad, preferred=256):
    """Largest of {256, 128} that divides n_pad (n_pad is a multiple of 128)."""
    return preferred if n_pad % preferred == 0 else LANE


# --------------------------------------------------------------------------- #
# Fused multi-layer kernel: A_hat + hidden state resident in VMEM.
# --------------------------------------------------------------------------- #
def _gcn_fused_kernel(a_ref, x_ref, w_ref, b_ref, o_ref, h_ref):
    layer = pl.program_id(0)
    last = pl.num_programs(0) - 1

    @pl.when(layer == 0)
    def _():
        h_ref[...] = x_ref[...]                         # f32 node features

    h_bf16 = h_ref[...].astype(jnp.bfloat16)
    # X @ W  (bf16 inputs, f32 accumulate on the MXU)
    xw = jnp.dot(h_bf16, w_ref[...], preferred_element_type=jnp.float32)
    # A_hat @ (X @ W)
    y = jnp.dot(a_ref[...], xw.astype(jnp.bfloat16),
                preferred_element_type=jnp.float32)
    y = y + b_ref[...]                                  # bias in f32
    y = jnp.where(layer < last, jnp.maximum(y, 0.0), y)  # ReLU on hidden layers
    h_ref[...] = y                                      # carry to next layer
    o_ref[...] = y                                      # per-layer activation out


def _gcn_fused_call(a_pad, x_pad, w_stack, b_stack):
    num_layers, fp, _ = w_stack.shape
    n_pad = a_pad.shape[0]
    flops = num_layers * (2 * n_pad * fp * fp + 2 * n_pad * n_pad * fp)
    bytes_accessed = (a_pad.size * 2 + x_pad.size * 4 + w_stack.size * 2
                      + b_stack.size * 4 + num_layers * n_pad * fp * 4)
    return pl.pallas_call(
        _gcn_fused_kernel,
        out_shape=jax.ShapeDtypeStruct((num_layers, n_pad, fp), jnp.float32),
        grid=(num_layers,),
        in_specs=[
            pl.BlockSpec((n_pad, n_pad), lambda l: (0, 0)),   # A: DMA'd once
            pl.BlockSpec((n_pad, fp), lambda l: (0, 0)),      # X: DMA'd once
            pl.BlockSpec((None, fp, fp), lambda l: (l, 0, 0)),
            pl.BlockSpec((None, 1, fp), lambda l: (l, 0, 0)),
        ],
        out_specs=pl.BlockSpec((None, n_pad, fp), lambda l: (l, 0, 0)),
        scratch_shapes=[pltpu.VMEM((n_pad, fp), jnp.float32)],
        compiler_params=pltpu.CompilerParams(
            dimension_semantics=("arbitrary",),
            vmem_limit_bytes=_VMEM_LIMIT_BYTES),
        cost_estimate=pl.CostEstimate(flops=flops, transcendentals=0,
                                      bytes_accessed=bytes_accessed),
    )(a_pad, x_pad, w_stack, b_stack)


# --------------------------------------------------------------------------- #
# General tiled path (large graphs): H = X @ W, then Y = A @ H + b (+ReLU).
# --------------------------------------------------------------------------- #
def _xw_kernel(x_ref, w_ref, o_ref):
    o_ref[...] = jnp.dot(x_ref[...], w_ref[...],
                         preferred_element_type=jnp.float32).astype(o_ref.dtype)


def _xw_call(x_bf16, w_bf16):
    n_pad, f_in_p = x_bf16.shape
    f_out_p = w_bf16.shape[1]
    tm = _pick_tile(n_pad)
    return pl.pallas_call(
        _xw_kernel,
        out_shape=jax.ShapeDtypeStruct((n_pad, f_out_p), jnp.bfloat16),
        grid=(n_pad // tm,),
        in_specs=[pl.BlockSpec((tm, f_in_p), lambda i: (i, 0)),
                  pl.BlockSpec((f_in_p, f_out_p), lambda i: (0, 0))],
        out_specs=pl.BlockSpec((tm, f_out_p), lambda i: (i, 0)),
        compiler_params=pltpu.CompilerParams(
            dimension_semantics=("parallel",),
            vmem_limit_bytes=_VMEM_LIMIT_BYTES),
    )(x_bf16, w_bf16)


def _agg_kernel(a_ref, h_ref, b_ref, o_ref, acc_ref, *, apply_relu):
    k = pl.program_id(1)

    @pl.when(k == 0)
    def _():
        acc_ref[...] = jnp.zeros_like(acc_ref)

    acc_ref[...] += jnp.dot(a_ref[...], h_ref[...],
                            preferred_element_type=jnp.float32)

    @pl.when(k == pl.num_programs(1) - 1)
    def _():
        y = acc_ref[...] + b_ref[...]       # bias + ReLU only on final k step
        if apply_relu:
            y = jnp.maximum(y, 0.0)
        o_ref[...] = y.astype(o_ref.dtype)


def _agg_call(a_bf16, h_bf16, b_f32, *, apply_relu):
    n_pad = a_bf16.shape[0]
    f_out_p = h_bf16.shape[1]
    tm = _pick_tile(n_pad)
    tk = _pick_tile(n_pad)
    kernel = functools.partial(_agg_kernel, apply_relu=apply_relu)
    flops = 2 * n_pad * n_pad * f_out_p
    bytes_accessed = a_bf16.size * 2 + h_bf16.size * 2 + n_pad * f_out_p * 4
    return pl.pallas_call(
        kernel,
        out_shape=jax.ShapeDtypeStruct((n_pad, f_out_p), jnp.float32),
        grid=(n_pad // tm, n_pad // tk),
        in_specs=[pl.BlockSpec((tm, tk), lambda i, k: (i, k)),
                  pl.BlockSpec((tk, f_out_p), lambda i, k: (k, 0)),
                  pl.BlockSpec((1, f_out_p), lambda i, k: (0, 0))],
        out_specs=pl.BlockSpec((tm, f_out_p), lambda i, k: (i, 0)),
        scratch_shapes=[pltpu.VMEM((tm, f_out_p), jnp.float32)],
        compiler_params=pltpu.CompilerParams(
            dimension_semantics=("parallel", "arbitrary"),
            vmem_limit_bytes=_VMEM_LIMIT_BYTES),
        cost_estimate=pl.CostEstimate(flops=flops, transcendentals=0,
                                      bytes_accessed=bytes_accessed),
    )(a_bf16, h_bf16, b_f32)


# --------------------------------------------------------------------------- #
# JAX glue
# --------------------------------------------------------------------------- #
def build_normalized_adjacency(edge_index, num_nodes):
    """A_hat = D^{-1/2} (A + I) D^{-1/2}, dense, from a (2, E) edge_index."""
    src = edge_index[0]
    dst = edge_index[1]
    # Scatter-ADD so duplicate edges sum (message-passing semantics).
    a = jnp.zeros((num_nodes, num_nodes), jnp.float32).at[dst, src].add(1.0)
    # Add self-loops only for nodes that lack one (add_remaining_self_loops).
    diag = jnp.diagonal(a)
    a = a + jnp.diag(jnp.where(diag == 0.0, 1.0, 0.0))
    deg = a.sum(axis=1)
    d_inv_sqrt = jnp.where(deg > 0, jax.lax.rsqrt(deg), 0.0)
    return d_inv_sqrt[:, None] * a * d_inv_sqrt[None, :]


def init_gcn_params(key, in_channels, hidden_channels, out_channels, num_layers):
    dims = [in_channels] + [hidden_channels] * (num_layers - 1) + [out_channels]
    weights, biases = [], []
    for i in range(num_layers):
        f_in, f_out = dims[i], dims[i + 1]
        key, wk = jax.random.split(key)
        limit = jnp.sqrt(6.0 / (f_in + f_out))          # glorot uniform
        w = jax.random.uniform(wk, (f_in, f_out), jnp.float32, -limit, limit)
        b = jnp.zeros((1, f_out), jnp.float32)
        weights.append(w)
        biases.append(b)
    return weights, biases


def gcn_forward(x, edge_index, weights, biases, *, force_path=None):
    """Mirrors GCN.forward: returns (final_x, [hidden activations])."""
    n, f_in = x.shape
    num_layers = len(weights)
    hid_c = weights[0].shape[1]
    out_c = weights[-1].shape[1]

    fp = _round_up(max([f_in] + [w.shape[1] for w in weights]), LANE)
    n_pad = _round_up(n, LANE)

    a_hat = build_normalized_adjacency(edge_index, n)
    a_pad = _pad2(a_hat, n_pad, n_pad).astype(jnp.bfloat16)
    x_pad = _pad2(x.astype(jnp.float32), n_pad, fp)

    w_stack = jnp.stack([_pad2(w, fp, fp) for w in weights]).astype(jnp.bfloat16)
    b_stack = jnp.stack([_pad2(b, 1, fp) for b in biases]).astype(jnp.float32)

    # VMEM footprint of the fused path: A + X + hidden scratch + W/out buffers.
    fused_bytes = (a_pad.size * 2 + x_pad.size * 4 + n_pad * fp * 4
                   + 2 * (fp * fp * 2 + n_pad * fp * 4))
    use_fused = fused_bytes <= _FUSED_VMEM_BUDGET_BYTES
    if force_path is not None:
        use_fused = (force_path == "fused")

    if use_fused:
        outs = _gcn_fused_call(a_pad, x_pad, w_stack, b_stack)  # (L, n_pad, fp)
        hidden = [outs[i, :n, :hid_c] for i in range(num_layers - 1)]
        final = outs[num_layers - 1, :n, :out_c]
        return final, hidden

    # General tiled path.
    h = x_pad.astype(jnp.bfloat16)
    hidden = []
    y = None
    for i in range(num_layers):
        hw = _xw_call(h, w_stack[i])                                   # bf16
        y = _agg_call(a_pad, hw, b_stack[i],
                      apply_relu=(i < num_layers - 1))                 # f32
        if i < num_layers - 1:
            hidden.append(y[:n, :hid_c])
        h = y.astype(jnp.bfloat16)
    return y[:n, :out_c], hidden


def gcn_reference(x, edge_index, weights, biases):
    """Plain-JAX f32 reference of the same forward pass."""
    n = x.shape[0]
    a_hat = build_normalized_adjacency(edge_index, n)
    x = x.astype(jnp.float32)
    out = []
    for i in range(len(weights) - 1):
        x = jnp.maximum(a_hat @ (x @ weights[i]) + biases[i], 0.0)
        out.append(x)
    x = a_hat @ (x @ weights[-1]) + biases[-1]
    return x, out


# --------------------------------------------------------------------------- #
# main
# --------------------------------------------------------------------------- #
if __name__ == "__main__":
    N, IN_C, HID_C, OUT_C, NUM_LAYERS = 16, 8, 32, 4, 3

    key = jax.random.PRNGKey(0)
    key, xk = jax.random.split(key)
    x = jax.random.normal(xk, (N, IN_C), dtype=jnp.float32)

    # Deterministic undirected ring graph: edges (i, i+1 mod N), both directions.
    idx = jnp.arange(N, dtype=jnp.int32)
    nxt = (idx + 1) % N
    edge_index = jnp.stack([jnp.concatenate([idx, nxt]),
                            jnp.concatenate([nxt, idx])], axis=0)

    weights, biases = init_gcn_params(key, IN_C, HID_C, OUT_C, NUM_LAYERS)

    ref_final, ref_hidden = gcn_reference(x, edge_index, weights, biases)

    # Exercise both kernel paths.
    final_f, hidden_f = gcn_forward(x, edge_index, weights, biases,
                                    force_path="fused")
    final_t, hidden_t = gcn_forward(x, edge_index, weights, biases,
                                    force_path="tiled")
    jax.block_until_ready(final_f)
    jax.block_until_ready(final_t)

    assert final_f.shape == (N, OUT_C) and final_t.shape == (N, OUT_C)
    assert len(hidden_f) == NUM_LAYERS - 1 and len(hidden_t) == NUM_LAYERS - 1
    assert all(h.shape == (N, HID_C) for h in hidden_f + hidden_t)

    def _close(a, b):
        return bool(jnp.allclose(a, b, rtol=1e-1, atol=1e-1))

    assert _close(final_f, ref_final) and _close(final_t, ref_final)
    assert all(_close(h, r) for h, r in zip(hidden_f, ref_hidden))
    assert all(_close(h, r) for h, r in zip(hidden_t, ref_hidden))

    print("KERNEL_OK")
</pallas_src>

<mosaic_0001>
module attributes {stable_mosaic.version = 11 : i64} {
  func.func @_gcn_fused_kernel(%arg0: i32, %arg1: memref<128x128xbf16, #tpu.memory_space<vmem>>, %arg2: memref<128x128xf32, #tpu.memory_space<vmem>>, %arg3: memref<1x128x128xbf16, #tpu.memory_space<vmem>>, %arg4: memref<1x1x128xf32, #tpu.memory_space<vmem>>, %arg5: memref<1x128x128xf32, #tpu.memory_space<vmem>>, %arg6: memref<128x128xf32, #tpu.memory_space<vmem>>) attributes {dimension_semantics = [#tpu.dimension_semantics<arbitrary>], iteration_bounds = array<i64: 3>, scalar_prefetch = 0 : i64, scratch_operands = 1 : i64, tpu.core_type = #tpu.core_type<tc>, window_params = [{pipeline_mode = #tpu.pipeline_mode<synchronous>, transform_indices = @transform_0, window_bounds = array<i64: 128, 128>}, {pipeline_mode = #tpu.pipeline_mode<synchronous>, transform_indices = @transform_1, window_bounds = array<i64: 128, 128>}, {transform_indices = @transform_2, window_bounds = array<i64: 1, 128, 128>}, {transform_indices = @transform_3, window_bounds = array<i64: 1, 1, 128>}, {transform_indices = @transform_4, window_bounds = array<i64: 1, 128, 128>}]} {
    %c0_i32 = arith.constant 0 : i32
    %0 = arith.cmpi eq, %arg0, %c0_i32 : i32
    %1 = arith.extui %0 : i1 to i32
    %c0_i32_0 = arith.constant 0 : i32
    %2 = arith.cmpi ne, %1, %c0_i32_0 : i32
    scf.if %2 {
      %c0_17 = arith.constant 0 : index
      %c0_18 = arith.constant 0 : index
      %23 = vector.load %arg2[%c0_17, %c0_18] : memref<128x128xf32, #tpu.memory_space<vmem>>, vector<128x128xf32>
      %c0_19 = arith.constant 0 : index
      %c0_20 = arith.constant 0 : index
      %24 = vector.load %arg6[%c0_19, %c0_20] : memref<128x128xf32, #tpu.memory_space<vmem>>, vector<128x128xf32>
      tpu.vector_store %arg6[%c0_19, %c0_20], %23 {strides = array<i32>} : memref<128x128xf32, #tpu.memory_space<vmem>>, vector<128x128xf32>,
    } else {
    }
    %c0 = arith.constant 0 : index
    %c0_1 = arith.constant 0 : index
    %3 = vector.load %arg6[%c0, %c0_1] : memref<128x128xf32, #tpu.memory_space<vmem>>, vector<128x128xf32>
    %4 = arith.truncf %3 : vector<128x128xf32> to vector<128x128xbf16>
    %c0_2 = arith.constant 0 : index
    %c0_3 = arith.constant 0 : index
    %c0_4 = arith.constant 0 : index
    %5 = vector.load %arg3[%c0_2, %c0_3, %c0_4] : memref<1x128x128xbf16, #tpu.memory_space<vmem>>, vector<1x128x128xbf16>
    %6 = vector.shape_cast %5 : vector<1x128x128xbf16> to vector<128x128xbf16>
    %cst = arith.constant dense<0.000000e+00> : vector<128x128xf32>
    %7 = tpu.matmul %4, %6, %cst {dimension_numbers = #tpu.dot_dimension_numbers<[1], [0], [0], [1], [0, 0, 1, 1], [], []>} : vector<128x128xbf16>, vector<128x128xbf16>, vector<128x128xf32> -> vector<128x128xf32>
    %c0_5 = arith.constant 0 : index
    %c0_6 = arith.constant 0 : index
    %8 = vector.load %arg1[%c0_5, %c0_6] : memref<128x128xbf16, #tpu.memory_space<vmem>>, vector<128x128xbf16>
    %9 = arith.truncf %7 : vector<128x128xf32> to vector<128x128xbf16>
    %cst_7 = arith.constant dense<0.000000e+00> : vector<128x128xf32>
    %10 = tpu.matmul %8, %9, %cst_7 {dimension_numbers = #tpu.dot_dimension_numbers<[1], [0], [0], [1], [0, 0, 1, 1], [], []>} : vector<128x128xbf16>, vector<128x128xbf16>, vector<128x128xf32> -> vector<128x128xf32>
    %c0_8 = arith.constant 0 : index
    %c0_9 = arith.constant 0 : index
    %c0_10 = arith.constant 0 : index
    %11 = vector.load %arg4[%c0_8, %c0_9, %c0_10] : memref<1x1x128xf32, #tpu.memory_space<vmem>>, vector<1x1x128xf32>
    %12 = vector.shape_cast %11 : vector<1x1x128xf32> to vector<1x128xf32>
    %13 = vector.broadcast %12 : vector<1x128xf32> to vector<128x128xf32>
    %14 = arith.addf %10, %13 : vector<128x128xf32>
    %c2_i32 = arith.constant 2 : i32
    %15 = arith.cmpi slt, %arg0, %c2_i32 : i32
    %cst_11 = arith.constant 0.000000e+00 : f32
    %16 = vector.broadcast %cst_11 : f32 to vector<128x128xf32>
    %17 = arith.maximumf %14, %16 : vector<128x128xf32>
    %18 = arith.select %15, %17, %14 : vector<128x128xf32>
    %c0_12 = arith.constant 0 : index
    %c0_13 = arith.constant 0 : index
    %19 = vector.load %arg6[%c0_12, %c0_13] : memref<128x128xf32, #tpu.memory_space<vmem>>, vector<128x128xf32>
    tpu.vector_store %arg6[%c0_12, %c0_13], %18 {strides = array<i32>} : memref<128x128xf32, #tpu.memory_space<vmem>>, vector<128x128xf32>,
    %c0_14 = arith.constant 0 : index
    %c0_15 = arith.constant 0 : index
    %c0_16 = arith.constant 0 : index
    %20 = vector.load %arg5[%c0_14, %c0_15, %c0_16] : memref<1x128x128xf32, #tpu.memory_space<vmem>>, vector<1x128x128xf32>
    %21 = vector.shape_cast %20 : vector<1x128x128xf32> to vector<128x128xf32>
    %22 = vector.shape_cast %18 : vector<128x128xf32> to vector<1x128x128xf32>
    tpu.vector_store %arg5[%c0_14, %c0_15, %c0_16], %22 {strides = array<i32>} : memref<1x128x128xf32, #tpu.memory_space<vmem>>, vector<1x128x128xf32>,
    return
  }
  func.func @transform_0(%arg0: i32) -> (i32, i32) {
    %c0_i32 = arith.constant 0 : i32
    %c0_i32_0 = arith.constant 0 : i32
    %c0_i32_1 = arith.constant 0 : i32
    return %c0_i32, %c0_i32_0 : i32, i32
  }
  func.func @transform_1(%arg0: i32) -> (i32, i32) {
    %c0_i32 = arith.constant 0 : i32
    %c0_i32_0 = arith.constant 0 : i32
    %c0_i32_1 = arith.constant 0 : i32
    return %c0_i32, %c0_i32_0 : i32, i32
  }
  func.func @transform_2(%arg0: i32) -> (i32, i32, i32) {
    %c0_i32 = arith.constant 0 : i32
    %c0_i32_0 = arith.constant 0 : i32
    %c0_i32_1 = arith.constant 0 : i32
    return %arg0, %c0_i32, %c0_i32_0 : i32, i32, i32
  }
  func.func @transform_3(%arg0: i32) -> (i32, i32, i32) {
    %c0_i32 = arith.constant 0 : i32
    %c0_i32_0 = arith.constant 0 : i32
    %c0_i32_1 = arith.constant 0 : i32
    return %arg0, %c0_i32, %c0_i32_0 : i32, i32, i32
  }
  func.func @transform_4(%arg0: i32) -> (i32, i32, i32) {
    %c0_i32 = arith.constant 0 : i32
    %c0_i32_0 = arith.constant 0 : i32
    %c0_i32_1 = arith.constant 0 : i32
    return %arg0, %c0_i32, %c0_i32_0 : i32, i32, i32
  }
}

</mosaic_0001>

<llo_original>
// kernel: tpu_custom_call.1
$region0: #{tpu_custom_call.1}
  #allocation0 [shape = 'u32[]', space=smem, size = 0x4, offset = 0x4, fixed_abs, tag = 'smem constant byte address 0x4 - core index']
  #allocation1 [shape = 'u32[144,128]{1,0:T(1,128)}', space=vmem, size = 0x12000, scoped, tag = 'internal scratch']
  #allocation2 [shape = 'f32[128,128]{1,0:T(8,128)}', space=vmem, size = 0x10000, scoped, tag = 'scratch operand']
  %s0 = inlined_call_operand.hbm [shape: bf16[128,128], index: 0, kind: input, shape index: {}]
  %s1 = inlined_call_operand.hbm [shape: f32[128,128], index: 1, kind: input, shape index: {}]
  %s2 = inlined_call_operand.hbm [shape: bf16[3,128,128], index: 2, kind: input, shape index: {}]
  %s3 = inlined_call_operand.vmem [shape: f32[3,1,128], index: 3, kind: input, shape index: {}]
  %s4 = inlined_call_operand.hbm [shape: f32[3,128,128], index: 4, kind: output, shape index: {}]
  %s5 = sld [smem:[#allocation0]]
  $region65: #{tpu_custom_call.1} parent=0
    _
  %s7 = ssub.s32 1, %s5
  %s8 = scalar_select 0, %s7, %s5
  $region1: #{tpu_custom_call.1} parent=0
    #allocation3 [shape = 'u8[32768]{0}', space=vmem, size = 0x8000, scoped, tag = 'input window, operand 0, single buffered']
    #allocation4 [shape = 's32[2]{0}', space=sflag, size = 0x8, scoped, tag = 'scoped memory for tpu_custom_call.1']
    #allocation5 [shape = 's32[2]{0}', space=sflag, size = 0x8, scoped, tag = 'scoped memory for tpu_custom_call.1']
    #allocation6 [shape = 'u8[65536]{0}', space=vmem, size = 0x10000, scoped, tag = 'input window, operand 1, single buffered']
    #allocation7 [shape = 's32[1]{0}', space=sflag, size = 0x4, scoped, tag = 'scoped memory for tpu_custom_call.1']
    #allocation8 [shape = 'u8[65536]{0}', space=vmem, size = 0x10000, scoped, tag = 'input window, operand 2']
    #allocation9 [shape = 'u8[131072]{0}', space=vmem, size = 0x20000, scoped, tag = 'output window, operand 0']
    %9 = vsyncpa [#allocation4], 0
    %10 = vsyncpa [#allocation7], 0
    %11 = vsyncpa [#allocation5], 0
    %s12 = scalar_lea.sflag [#allocation5], 1
    %13 = vsyncpa %s12, 0
    loop: start=0, step=1, limit=5
    $region2: #{tpu_custom_call.1} parent=1 // loop_pre_header
      _
    $region3: #{tpu_custom_call.1} parent=1 // loop_header
      %s15 = sphi 0, %s19
      %p16 = scmp.ge.s32.totalorder %s15, 5
      %s23 = sphi 0, %s23
      %s25 = sphi 0, %s23
      %s26 = sphi 0, %s25
      %s40 = sphi 0, %s26
      %s44 = sphi 0, %s44
      %s46 = sphi 0, %s44
      %s47 = sphi 0, %s46
      %s61 = sphi 0, %s47
      %s67 = sphi 0, %s69
      %s70 = sphi 0, %s67
      %s71 = sphi 0, %s70
      %s87 = sphi 0, %s71
      %s93 = sphi 0, %s95
      %s96 = sphi 0, %s93
      %s97 = sphi 0, %s96
      %s113 = sphi 0, %s97
      %s119 = sphi 0, %s121
      %s122 = sphi 0, %s119
      %s123 = sphi 0, %s122
      %s139 = sphi 0, %s123
    $region4: #{tpu_custom_call.1} parent=1 // loop_header_branch
      %18 = sbr.rel (%p16) target = $region8
    $region5: #{tpu_custom_call.1} parent=1 // loop_body
      %s20 = ssub.s32 %s15, 1
      %s21 = ssub.s32 %s15, 2
      %s22 = sadd.s32 %s15, 1
      %s24 = sadd.s32 %s23, 1
      %p27 = scmp.eq.s32.totalorder %s15, 2
      %p28 = scmp.ne.s32.totalorder %s23, %s25
      %p29 = scmp.eq.s32.totalorder %s15, 0
      %p30 = por %p28, %p29
      %p31 = scmp.ne.s32.totalorder %s23, %s25
      %p32 = scmp.eq.s32.totalorder %s20, 2
      %p33 = por %p31, %p32
      %p34 = scmp.ne.s32.totalorder %s25, %s26
      %p35 = scmp.eq.s32.totalorder %s20, 0
      %p36 = por %p34, %p35
      %p37 = scmp.ne.s32.totalorder %s25, %s26
      %p38 = scmp.eq.s32.totalorder %s21, 2
      %p39 = por %p37, %p38
      %p41 = scmp.ne.s32.totalorder %s26, %s40
      %p42 = scmp.eq.s32.totalorder %s21, 0
      %p43 = por %p41, %p42
      %s45 = sadd.s32 %s44, 1
      %p48 = scmp.eq.s32.totalorder %s15, 2
      %p49 = scmp.ne.s32.totalorder %s44, %s46
      %p50 = scmp.eq.s32.totalorder %s15, 0
      %p51 = por %p49, %p50
      %p52 = scmp.ne.s32.totalorder %s44, %s46
      %p53 = scmp.eq.s32.totalorder %s20, 2
      %p54 = por %p52, %p53
      %p55 = scmp.ne.s32.totalorder %s46, %s47
      %p56 = scmp.eq.s32.totalorder %s20, 0
      %p57 = por %p55, %p56
      %p58 = scmp.ne.s32.totalorder %s46, %s47
      %p59 = scmp.eq.s32.totalorder %s21, 2
      %p60 = por %p58, %p59
      %p62 = scmp.ne.s32.totalorder %s47, %s61
      %p63 = scmp.eq.s32.totalorder %s21, 0
      %p64 = por %p62, %p63
      %s65 = ssub.s32 %s15, %s22
      %p66 = scmp.eq.s32.totalorder %s65, 0
      %s68 = sadd.s32 %s67, 1
      %s69 = scalar_select %p66, %s67, %s68
      %p72 = pneg %p66
      %p73 = scmp.eq.s32.totalorder %s15, 2
      %p74 = por %p72, %p73
      %p75 = scmp.ne.s32.totalorder %s67, %s70
      %p76 = scmp.eq.s32.totalorder %s15, 0
      %p77 = por %p75, %p76
      %p78 = scmp.ne.s32.totalorder %s67, %s70
      %p79 = scmp.eq.s32.totalorder %s20, 2
      %p80 = por %p78, %p79
      %p81 = scmp.ne.s32.totalorder %s70, %s71
      %p82 = scmp.eq.s32.totalorder %s20, 0
      %p83 = por %p81, %p82
      %p84 = scmp.ne.s32.totalorder %s70, %s71
      %p85 = scmp.eq.s32.totalorder %s21, 2
      %p86 = por %p84, %p85
      %p88 = scmp.ne.s32.totalorder %s71, %s87
      %p89 = scmp.eq.s32.totalorder %s21, 0
      %p90 = por %p88, %p89
      %s91 = ssub.s32 %s15, %s22
      %p92 = scmp.eq.s32.totalorder %s91, 0
      %s94 = sadd.s32 %s93, 1
      %s95 = scalar_select %p92, %s93, %s94
      %p98 = pneg %p92
      %p99 = scmp.eq.s32.totalorder %s15, 2
      %p100 = por %p98, %p99
      %p101 = scmp.ne.s32.totalorder %s93, %s96
      %p102 = scmp.eq.s32.totalorder %s15, 0
      %p103 = por %p101, %p102
      %p104 = scmp.ne.s32.totalorder %s93, %s96
      %p105 = scmp.eq.s32.totalorder %s20, 2
      %p106 = por %p104, %p105
      %p107 = scmp.ne.s32.totalorder %s96, %s97
      %p108 = scmp.eq.s32.totalorder %s20, 0
      %p109 = por %p107, %p108
      %p110 = scmp.ne.s32.totalorder %s96, %s97
      %p111 = scmp.eq.s32.totalorder %s21, 2
      %p112 = por %p110, %p111
      %p114 = scmp.ne.s32.totalorder %s97, %s113
      %p115 = scmp.eq.s32.totalorder %s21, 0
      %p116 = por %p114, %p115
      %s117 = ssub.s32 %s15, %s22
      %p118 = scmp.eq.s32.totalorder %s117, 0
      %s120 = sadd.s32 %s119, 1
      %s121 = scalar_select %p118, %s119, %s120
      %p124 = pneg %p118
      %p125 = scmp.eq.s32.totalorder %s15, 2
      %p126 = por %p124, %p125
      %p127 = scmp.ne.s32.totalorder %s119, %s122
      %p128 = scmp.eq.s32.totalorder %s15, 0
      %p129 = por %p127, %p128
      %p130 = scmp.ne.s32.totalorder %s119, %s122
      %p131 = scmp.eq.s32.totalorder %s20, 2
      %p132 = por %p130, %p131
      %p133 = scmp.ne.s32.totalorder %s122, %s123
      %p134 = scmp.eq.s32.totalorder %s20, 0
      %p135 = por %p133, %p134
      %p136 = scmp.ne.s32.totalorder %s122, %s123
      %p137 = scmp.eq.s32.totalorder %s21, 2
      %p138 = por %p136, %p137
      %p140 = scmp.ne.s32.totalorder %s123, %s139
      %p141 = scmp.eq.s32.totalorder %s21, 0
      %p142 = por %p140, %p141
      %p143 = scmp.le.s32.totalorder 1, %s15
      %p144 = scmp.lt.s32.totalorder %s15, 4
      %p145 = pnand %p143, %p144
      %p146 = pneg %p145
      // Predicated region
      $region9: #{tpu_custom_call.1} parent=5 // pred_check
        _
      $region10: #{tpu_custom_call.1} parent=5 // pred_check_branch
        %148 = sbr.rel (%p145) target = $region12
      $region11: #{tpu_custom_call.1} parent=5 // pred_region
        %s149 = ssub.s32 %s15, 1
        // Predicated region
        $region13: #{tpu_custom_call.1} parent=11 // pred_check
          %p150 = pneg %p36
        $region14: #{tpu_custom_call.1} parent=11 // pred_check_branch
          %152 = sbr.rel (%p150) target = $region16
        $region15: #{tpu_custom_call.1} parent=11 // pred_region
          %s154 = ssub.s32 1024, 1024
          %155 = vsyncadd [#allocation4], %s154
          %s156 = sshll.u32 [#allocation3], 4
          %s157 = int_to_ptr.vmem [resolvable:$true] %s156
          %162 = dma.hbm_to_vmem [thread:$0]  %s0, 1024, %s157, [#allocation4], 64, 64, 4
        $region16: #{tpu_custom_call.1} parent=11 // pred_fallthru
          _
        // Predicated region
        $region17: #{tpu_custom_call.1} parent=11 // pred_check
          %p163 = pneg %p57
        $region18: #{tpu_custom_call.1} parent=11 // pred_check_branch
          %165 = sbr.rel (%p163) target = $region20
        $region19: #{tpu_custom_call.1} parent=11 // pred_region
          %s167 = ssub.s32 2048, 2048
          %168 = vsyncadd [#allocation7], %s167
          %s169 = sshll.u32 [#allocation6], 4
          %s170 = int_to_ptr.vmem [resolvable:$true] %s169
          %175 = dma.hbm_to_vmem [thread:$0]  %s1, 2048, %s170, [#allocation7], 128, 128, 8
        $region20: #{tpu_custom_call.1} parent=11 // pred_fallthru
          _
      $region12: #{tpu_custom_call.1} parent=5 // pred_fallthru
        _
      %p176 = scmp.lt.s32.totalorder %s15, 3
      // Predicated region
      $region21: #{tpu_custom_call.1} parent=5 // pred_check
        %p177 = pneg %p176
      $region22: #{tpu_custom_call.1} parent=5 // pred_check_branch
        %179 = sbr.rel (%p177) target = $region24
      $region23: #{tpu_custom_call.1} parent=5 // pred_region
        // Predicated region
        $region25: #{tpu_custom_call.1} parent=23 // pred_check
          %p180 = pneg %p77
        $region26: #{tpu_custom_call.1} parent=23 // pred_check_branch
          %182 = sbr.rel (%p180) target = $region28
        $region27: #{tpu_custom_call.1} parent=23 // pred_region
          %s183 = sand.u32 %s15, 1
          %s184 = scalar_lea.sflag [#allocation4], %s183
          %s185 = sand.u32 %s67, 1
          %s186 = smul.addr %s185, 64
          %s187 = scalar_lea.vmem [#allocation8], %s186
          %s189 = ssub.s32 1024, 1024
          %190 = vsyncadd %s184, %s189
          %s191 = smul.addr %s15, 16
          %s192 = smul.addr %s191, 64
          %s193 = scalar_lea.hbm %s2, %s192
          %s194 = sshll.u32 %s187, 4
          %s195 = int_to_ptr.vmem [resolvable:$true] %s194
          %200 = dma.hbm_to_vmem [thread:$0]  %s193, 1024, %s195, %s184, 64, 64, 4
        $region28: #{tpu_custom_call.1} parent=23 // pred_fallthru
          _
        // Predicated region
        $region29: #{tpu_custom_call.1} parent=23 // pred_check
          %p201 = pneg %p103
        $region30: #{tpu_custom_call.1} parent=23 // pred_check_branch
          %203 = sbr.rel (%p201) target = $region32
        $region31: #{tpu_custom_call.1} parent=23 // pred_region
          %p204 = scmp.lt.s32.totalorder %s15, 2
          %s205 = scalar_select %p204, %s15, 2
          %s206 = scalar_lea.vmem %s3, %s205
        $region32: #{tpu_custom_call.1} parent=23 // pred_fallthru
          _
      $region24: #{tpu_custom_call.1} parent=5 // pred_fallthru
        _
      %p207 = scmp.le.s32.totalorder 1, %s15
      %p208 = scmp.lt.s32.totalorder %s15, 4
      %p209 = pnand %p207, %p208
      %p210 = pneg %p209
      // Predicated region
      $region33: #{tpu_custom_call.1} parent=5 // pred_check
        _
      $region34: #{tpu_custom_call.1} parent=5 // pred_check_branch
        %212 = sbr.rel (%p209) target = $region36
      $region35: #{tpu_custom_call.1} parent=5 // pred_region
        %s213 = ssub.s32 %s15, 1
        // Predicated region
        $region37: #{tpu_custom_call.1} parent=35 // pred_check
          %p214 = pneg %p36
        $region38: #{tpu_custom_call.1} parent=35 // pred_check_branch
          %216 = sbr.rel (%p214) target = $region40
        $region39: #{tpu_custom_call.1} parent=35 // pred_region
          %217 = dma.done [#allocation4], 1024
        $region40: #{tpu_custom_call.1} parent=35 // pred_fallthru
          _
        // Predicated region
        $region41: #{tpu_custom_call.1} parent=35 // pred_check
          %p218 = pneg %p57
        $region42: #{tpu_custom_call.1} parent=35 // pred_check_branch
          %220 = sbr.rel (%p218) target = $region44
        $region43: #{tpu_custom_call.1} parent=35 // pred_region
          %221 = dma.done [#allocation7], 2048
        $region44: #{tpu_custom_call.1} parent=35 // pred_fallthru
          _
        %s222 = sand.u32 %s20, 1
        %s223 = scalar_lea.sflag [#allocation4], %s222
        %s224 = sand.u32 %s70, 1
        %s225 = smul.addr %s224, 64
        %s226 = scalar_lea.vmem [#allocation8], %s225
        // Predicated region
        $region45: #{tpu_custom_call.1} parent=35 // pred_check
          %p227 = pneg %p83
        $region46: #{tpu_custom_call.1} parent=35 // pred_check_branch
          %229 = sbr.rel (%p227) target = $region48
        $region47: #{tpu_custom_call.1} parent=35 // pred_region
          %230 = dma.done %s223, 1024
        $region48: #{tpu_custom_call.1} parent=35 // pred_fallthru
          _
        %p231 = pneg %p36
        %p232 = pneg %p33
        %p233 = pneg %p57
        %p234 = pneg %p54
        %s235 = sand.u32 %s20, 1
        %s236 = scalar_lea.sflag [#allocation4], %s235
        %s237 = sand.u32 %s70, 1
        %s238 = smul.addr %s237, 64
        %s239 = scalar_lea.vmem [#allocation8], %s238
        %p240 = pneg %p83
        %p241 = pneg %p80
        %p242 = scmp.lt.s32.totalorder %s20, 2
        %s243 = scalar_select %p242, %s20, 2
        %s244 = scalar_lea.vmem %s3, %s243
        %p245 = pneg %p109
        %p246 = pneg %p106
        %p247 = pneg %p135
        %p248 = pneg %p132
        %s249 = sand.u32 %s122, 1
        %s250 = scalar_lea.sflag [#allocation5], %s249
        %s251 = sand.u32 %s122, 1
        %s252 = smul.addr %s251, 128
        %s253 = scalar_lea.vmem [#allocation9], %s252
        %p254 = scmp.lt.s32.totalorder %s20, 2
        %s255 = scalar_select %p254, %s20, 2
        %s256 = scalar_lea.vmem %s3, %s255
        %p258 = scmp.eq.s32.totalorder %s20, 0
        // Predicated region
        $region49: #{tpu_custom_call.1} parent=35 // pred_check
          %p259 = pneg %p258
        $region50: #{tpu_custom_call.1} parent=35 // pred_check_branch
          %261 = sbr.rel (%p259) target = $region52
        $region51: #{tpu_custom_call.1} parent=35 // pred_region
          %v262 = vld [vmem:[#allocation6] sm:$0xff]
          %v263 = vld [vmem:[#allocation6 + $0x8] sm:$0xff]
          %v264 = vld [vmem:[#allocation6 + $0x10] sm:$0xff]
          %v265 = vld [vmem:[#allocation6 + $0x18] sm:$0xff]
          %v266 = vld [vmem:[#allocation6 + $0x20] sm:$0xff]
          %v267 = vld [vmem:[#allocation6 + $0x28] sm:$0xff]
          %v268 = vld [vmem:[#allocation6 + $0x30] sm:$0xff]
          %v269 = vld [vmem:[#allocation6 + $0x38] sm:$0xff]
          %v270 = vld [vmem:[#allocation6 + $0x40] sm:$0xff]
          %v271 = vld [vmem:[#allocation6 + $0x48] sm:$0xff]
          %v272 = vld [vmem:[#allocation6 + $0x50] sm:$0xff]
          %v273 = vld [vmem:[#allocation6 + $0x58] sm:$0xff]
          %v274 = vld [vmem:[#allocation6 + $0x60] sm:$0xff]
          %v275 = vld [vmem:[#allocation6 + $0x68] sm:$0xff]
          %v276 = vld [vmem:[#allocation6 + $0x70] sm:$0xff]
          %v277 = vld [vmem:[#allocation6 + $0x78] sm:$0xff]
          %278 = vst [vmem:[#allocation2] sm:$0xff] %v262
          %279 = vst [vmem:[#allocation2 + $0x8] sm:$0xff] %v263
          %280 = vst [vmem:[#allocation2 + $0x10] sm:$0xff] %v264
          %281 = vst [vmem:[#allocation2 + $0x18] sm:$0xff] %v265
          %282 = vst [vmem:[#allocation2 + $0x20] sm:$0xff] %v266
          %283 = vst [vmem:[#allocation2 + $0x28] sm:$0xff] %v267
          %284 = vst [vmem:[#allocation2 + $0x30] sm:$0xff] %v268
          %285 = vst [vmem:[#allocation2 + $0x38] sm:$0xff] %v269
          %286 = vst [vmem:[#allocation2 + $0x40] sm:$0xff] %v270
          %287 = vst [vmem:[#allocation2 + $0x48] sm:$0xff] %v271
          %288 = vst [vmem:[#allocation2 + $0x50] sm:$0xff] %v272
          %289 = vst [vmem:[#allocation2 + $0x58] sm:$0xff] %v273
          %290 = vst [vmem:[#allocation2 + $0x60] sm:$0xff] %v274
          %291 = vst [vmem:[#allocation2 + $0x68] sm:$0xff] %v275
          %292 = vst [vmem:[#allocation2 + $0x70] sm:$0xff] %v276
          %293 = vst [vmem:[#allocation2 + $0x78] sm:$0xff] %v277
        $region52: #{tpu_custom_call.1} parent=35 // pred_fallthru
          _
        %v294 = vld [vmem:[#allocation2] sm:$0xff]
        %v295 = vld [vmem:[#allocation2 + $0x8] sm:$0xff]
        %v296 = vld [vmem:[#allocation2 + $0x10] sm:$0xff]
        %v297 = vld [vmem:[#allocation2 + $0x18] sm:$0xff]
        %v298 = vld [vmem:[#allocation2 + $0x20] sm:$0xff]
        %v299 = vld [vmem:[#allocation2 + $0x28] sm:$0xff]
        %v300 = vld [vmem:[#allocation2 + $0x30] sm:$0xff]
        %v301 = vld [vmem:[#allocation2 + $0x38] sm:$0xff]
        %v302 = vld [vmem:[#allocation2 + $0x40] sm:$0xff]
        %v303 = vld [vmem:[#allocation2 + $0x48] sm:$0xff]
        %v304 = vld [vmem:[#allocation2 + $0x50] sm:$0xff]
        %v305 = vld [vmem:[#allocation2 + $0x58] sm:$0xff]
        %v306 = vld [vmem:[#allocation2 + $0x60] sm:$0xff]
        %v307 = vld [vmem:[#allocation2 + $0x68] sm:$0xff]
        %v308 = vld [vmem:[#allocation2 + $0x70] sm:$0xff]
        %v309 = vld [vmem:[#allocation2 + $0x78] sm:$0xff]
        %v310 = vpack.c.bf16 %v295, %v294
        %v311 = vpack.c.bf16 %v297, %v296
        %v312 = vpack.c.bf16 %v299, %v298
        %v313 = vpack.c.bf16 %v301, %v300
        %v314 = vpack.c.bf16 %v303, %v302
        %v315 = vpack.c.bf16 %v305, %v304
        %v316 = vpack.c.bf16 %v307, %v306
        %v317 = vpack.c.bf16 %v309, %v308
        %v318 = vld [vmem:[%s226] sm:$0xf]
        %v319 = vld [vmem:[%s226 + $0x4] sm:$0xf]
        %v320 = vld [vmem:[%s226 + $0x8] sm:$0xf]
        %v321 = vld [vmem:[%s226 + $0xc] sm:$0xf]
        %v322 = vld [vmem:[%s226 + $0x10] sm:$0xf]
        %v323 = vld [vmem:[%s226 + $0x14] sm:$0xf]
        %v324 = vld [vmem:[%s226 + $0x18] sm:$0xf]
        %v325 = vld [vmem:[%s226 + $0x1c] sm:$0xf]
        %v326 = vld [vmem:[%s226 + $0x20] sm:$0xf]
        %v327 = vld [vmem:[%s226 + $0x24] sm:$0xf]
        %v328 = vld [vmem:[%s226 + $0x28] sm:$0xf]
        %v329 = vld [vmem:[%s226 + $0x2c] sm:$0xf]
        %v330 = vld [vmem:[%s226 + $0x30] sm:$0xf]
        %v331 = vld [vmem:[%s226 + $0x34] sm:$0xf]
        %v332 = vld [vmem:[%s226 + $0x38] sm:$0xf]
        %v333 = vld [vmem:[%s226 + $0x3c] sm:$0xf]
        %v350 = vunpack.c.l.b16 %v318
        %v351 = vunpack.c.l.b16 %v319
        %v352 = vunpack.c.l.b16 %v320
        %v353 = vunpack.c.l.b16 %v321
        %v354 = vunpack.c.l.b16 %v322
        %v355 = vunpack.c.l.b16 %v323
        %v356 = vunpack.c.l.b16 %v324
        %v357 = vunpack.c.l.b16 %v325
        %v358 = vunpack.c.l.b16 %v326
        %v359 = vunpack.c.l.b16 %v327
        %v360 = vunpack.c.l.b16 %v328
        %v361 = vunpack.c.l.b16 %v329
        %v362 = vunpack.c.l.b16 %v330
        %v363 = vunpack.c.l.b16 %v331
        %v364 = vunpack.c.l.b16 %v332
        %v365 = vunpack.c.l.b16 %v333
        %v366 = vpack.c.b16 %v351, %v350
        %v367 = vpack.c.b16 %v353, %v352
        %v368 = vpack.c.b16 %v355, %v354
        %v369 = vpack.c.b16 %v357, %v356
        %v370 = vpack.c.b16 %v359, %v358
        %v371 = vpack.c.b16 %v361, %v360
        %v372 = vpack.c.b16 %v363, %v362
        %v373 = vpack.c.b16 %v365, %v364
        %382 = vmatprep.subr.bf16.mxu0 0
        %383 = vmatpush1.bf16.msra.mxu0 %v366
        %384 = vmatprep.subr.bf16.mxu0 0
        %385 = vmatpush1.bf16.msra.mxu0 %v367
        %386 = vmatprep.subr.bf16.mxu0 0
        %387 = vmatpush1.bf16.msra.mxu0 %v368
        %388 = vmatprep.subr.bf16.mxu0 0
        %389 = vmatpush1.bf16.msra.mxu0 %v369
        %390 = vmatprep.subr.bf16.mxu0 0
        %391 = vmatpush1.bf16.msra.mxu0 %v370
        %392 = vmatprep.subr.bf16.mxu0 0
        %393 = vmatpush1.bf16.msra.mxu0 %v371
        %394 = vmatprep.subr.bf16.mxu0 0
        %395 = vmatpush1.bf16.msra.mxu0 %v372
        %396 = vmatprep.subr.bf16.mxu0 0
        %397 = vmatpush1.bf16.msra.mxu0 %v373
        %398 = vmatprep.subr.bf16.mxu0 0
        %399 = vmatpush1.bf16.msra.mxu0 0
        %400 = vmatprep.subr.bf16.mxu0 0
        %401 = vmatpush1.bf16.msra.mxu0 0
        %402 = vmatprep.subr.bf16.mxu0 0
        %403 = vmatpush1.bf16.msra.mxu0 0
        %404 = vmatprep.subr.bf16.mxu0 0
        %405 = vmatpush1.bf16.msra.mxu0 0
        %406 = vmatprep.subr.bf16.mxu0 0
        %407 = vmatpush1.bf16.msra.mxu0 0
        %408 = vmatprep.subr.bf16.mxu0 0
        %409 = vmatpush1.bf16.msra.mxu0 0
        %410 = vmatprep.subr.bf16.mxu0 0
        %411 = vmatpush1.bf16.msra.mxu0 0
        %412 = vmatprep.subr.bf16.mxu0 0
        %413 = vmatpush1.bf16.msra.mxu0 0
        %414 = vmatprep.mubr.bf16.mxu0 0
        %415 = vmatmul.mubr.bf16.gmra.mrb[0].mxu0 %v310
        %v416 = vpop.f32.mrb[0].mxu0
        %v417 = vadd.f32 0.0, %v416
        %v418 = vpop.f32.mrb[0].mxu0
        %v419 = vpop.f32.mrb[0].mxu0
        %v420 = vadd.f32 0.0, %v419
        %v421 = vpop.f32.mrb[0].mxu0
        %422 = vmatprep.mubr.bf16.mxu0 0
        %423 = vmatmul.mubr.bf16.gmra.mrb[0].mxu0 %v311
        %v424 = vpop.f32.mrb[0].mxu0
        %v425 = vadd.f32 0.0, %v424
        %v426 = vpop.f32.mrb[0].mxu0
        %v427 = vpop.f32.mrb[0].mxu0
        %v428 = vadd.f32 0.0, %v427
        %v429 = vpop.f32.mrb[0].mxu0
        %430 = vmatprep.mubr.bf16.mxu0 0
        %431 = vmatmul.mubr.bf16.gmra.mrb[0].mxu0 %v312
        %v432 = vpop.f32.mrb[0].mxu0
        %v433 = vadd.f32 0.0, %v432
        %v434 = vpop.f32.mrb[0].mxu0
        %v435 = vpop.f32.mrb[0].mxu0
        %v436 = vadd.f32 0.0, %v435
        %v437 = vpop.f32.mrb[0].mxu0
        %438 = vmatprep.mubr.bf16.mxu0 0
        %439 = vmatmul.mubr.bf16.gmra.mrb[0].mxu0 %v313
        %v440 = vpop.f32.mrb[0].mxu0
        %v441 = vadd.f32 0.0, %v440
        %v442 = vpop.f32.mrb[0].mxu0
        %v443 = vpop.f32.mrb[0].mxu0
        %v444 = vadd.f32 0.0, %v443
        %v445 = vpop.f32.mrb[0].mxu0
        %446 = vmatprep.mubr.bf16.mxu0 0
        %447 = vmatmul.mubr.bf16.gmra.mrb[0].mxu0 %v314
        %v448 = vpop.f32.mrb[0].mxu0
        %v449 = vadd.f32 0.0, %v448
        %v450 = vpop.f32.mrb[0].mxu0
        %v451 = vpop.f32.mrb[0].mxu0
        %v452 = vadd.f32 0.0, %v451
        %v453 = vpop.f32.mrb[0].mxu0
        %454 = vmatprep.mubr.bf16.mxu0 0
        %455 = vmatmul.mubr.bf16.gmra.mrb[0].mxu0 %v315
        %v456 = vpop.f32.mrb[0].mxu0
        %v457 = vadd.f32 0.0, %v456
        %v458 = vpop.f32.mrb[0].mxu0
        %v459 = vpop.f32.mrb[0].mxu0
        %v460 = vadd.f32 0.0, %v459
        %v461 = vpop.f32.mrb[0].mxu0
        %462 = vmatprep.mubr.bf16.mxu0 0
        %463 = vmatmul.mubr.bf16.gmra.mrb[0].mxu0 %v316
        %v464 = vpop.f32.mrb[0].mxu0
        %v465 = vadd.f32 0.0, %v464
        %v466 = vpop.f32.mrb[0].mxu0
        %v467 = vpop.f32.mrb[0].mxu0
        %v468 = vadd.f32 0.0, %v467
        %v469 = vpop.f32.mrb[0].mxu0
        %470 = vmatprep.mubr.bf16.mxu0 0
        %471 = vmatmul.mubr.bf16.gmra.mrb[0].mxu0 %v317
        %v472 = vpop.f32.mrb[0].mxu0
        %v473 = vadd.f32 0.0, %v472
        %v474 = vpop.f32.mrb[0].mxu0
        %v475 = vpop.f32.mrb[0].mxu0
        %v476 = vadd.f32 0.0, %v475
        %v477 = vpop.f32.mrb[0].mxu0
        %478 = vdwg.mxu0
        %v479 = vld [vmem:[#allocation3] sm:$0xf]
        %v480 = vld [vmem:[#allocation3 + $0x4] sm:$0xf]
        %v481 = vld [vmem:[#allocation3 + $0x8] sm:$0xf]
        %v482 = vld [vmem:[#allocation3 + $0xc] sm:$0xf]
        %v483 = vld [vmem:[#allocation3 + $0x10] sm:$0xf]
        %v484 = vld [vmem:[#allocation3 + $0x14] sm:$0xf]
        %v485 = vld [vmem:[#allocation3 + $0x18] sm:$0xf]
        %v486 = vld [vmem:[#allocation3 + $0x1c] sm:$0xf]
        %v487 = vld [vmem:[#allocation3 + $0x20] sm:$0xf]
        %v488 = vld [vmem:[#allocation3 + $0x24] sm:$0xf]
        %v489 = vld [vmem:[#allocation3 + $0x28] sm:$0xf]
        %v490 = vld [vmem:[#allocation3 + $0x2c] sm:$0xf]
        %v491 = vld [vmem:[#allocation3 + $0x30] sm:$0xf]
        %v492 = vld [vmem:[#allocation3 + $0x34] sm:$0xf]
        %v493 = vld [vmem:[#allocation3 + $0x38] sm:$0xf]
        %v494 = vld [vmem:[#allocation3 + $0x3c] sm:$0xf]
        %v495 = vpack.c.bf16 %v420, %v417
        %v496 = vpack.c.bf16 %v428, %v425
        %v497 = vpack.c.bf16 %v436, %v433
        %v498 = vpack.c.bf16 %v444, %v441
        %v499 = vpack.c.bf16 %v452, %v449
        %v500 = vpack.c.bf16 %v460, %v457
        %v501 = vpack.c.bf16 %v468, %v465
        %v502 = vpack.c.bf16 %v476, %v473
        %v503 = vld [vmem:[%s256] sm:$0x1]
        %v505 = vlaneseq
        %v506 = vshrl.u32 %v505, 7
        %v507 = vsub.s32 0, %v506
        %v508 = vrot.slane %v503, %v507
        %v526 = vunpack.c.l.b16 %v479
        %v527 = vunpack.c.l.b16 %v480
        %v528 = vunpack.c.l.b16 %v481
        %v529 = vunpack.c.l.b16 %v482
        %v530 = vunpack.c.l.b16 %v483
        %v531 = vunpack.c.l.b16 %v484
        %v532 = vunpack.c.l.b16 %v485
        %v533 = vunpack.c.l.b16 %v486
        %v534 = vunpack.c.l.b16 %v487
        %v535 = vunpack.c.l.b16 %v488
        %v536 = vunpack.c.l.b16 %v489
        %v537 = vunpack.c.l.b16 %v490
        %v538 = vunpack.c.l.b16 %v491
        %v539 = vunpack.c.l.b16 %v492
        %v540 = vunpack.c.l.b16 %v493
        %v541 = vunpack.c.l.b16 %v494
        %v542 = vpack.c.b16 %v527, %v526
        %v543 = vpack.c.b16 %v529, %v528
        %v544 = vpack.c.b16 %v531, %v530
        %v545 = vpack.c.b16 %v533, %v532
        %v546 = vpack.c.b16 %v535, %v534
        %v547 = vpack.c.b16 %v537, %v536
        %v548 = vpack.c.b16 %v539, %v538
        %v549 = vpack.c.b16 %v541, %v540
        %558 = vmatprep.subr.bf16.mxu0 0
        %559 = vmatpush1.bf16.msra.mxu0 %v495
        %560 = vmatprep.subr.bf16.mxu0 0
        %561 = vmatpush1.bf16.msra.mxu0 %v496
        %562 = vmatprep.subr.bf16.mxu0 0
        %563 = vmatpush1.bf16.msra.mxu0 %v497
        %564 = vmatprep.subr.bf16.mxu0 0
        %565 = vmatpush1.bf16.msra.mxu0 %v498
        %566 = vmatprep.subr.bf16.mxu0 0
        %567 = vmatpush1.bf16.msra.mxu0 %v499
        %568 = vmatprep.subr.bf16.mxu0 0
        %569 = vmatpush1.bf16.msra.mxu0 %v500
        %570 = vmatprep.subr.bf16.mxu0 0
        %571 = vmatpush1.bf16.msra.mxu0 %v501
        %572 = vmatprep.subr.bf16.mxu0 0
        %573 = vmatpush1.bf16.msra.mxu0 %v502
        %574 = vmatprep.subr.bf16.mxu0 0
        %575 = vmatpush1.bf16.msra.mxu0 0
        %576 = vmatprep.subr.bf16.mxu0 0
        %577 = vmatpush1.bf16.msra.mxu0 0
        %578 = vmatprep.subr.bf16.mxu0 0
        %579 = vmatpush1.bf16.msra.mxu0 0
        %580 = vmatprep.subr.bf16.mxu0 0
        %581 = vmatpush1.bf16.msra.mxu0 0
        %582 = vmatprep.subr.bf16.mxu0 0
        %583 = vmatpush1.bf16.msra.mxu0 0
        %584 = vmatprep.subr.bf16.mxu0 0
        %585 = vmatpush1.bf16.msra.mxu0 0
        %586 = vmatprep.subr.bf16.mxu0 0
        %587 = vmatpush1.bf16.msra.mxu0 0
        %588 = vmatprep.subr.bf16.mxu0 0
        %589 = vmatpush1.bf16.msra.mxu0 0
        %590 = vmatprep.mubr.bf16.mxu0 0
        %591 = vmatmul.mubr.bf16.gmra.mrb[0].mxu0 %v542
        %v592 = vpop.f32.mrb[0].mxu0
        %v593 = vadd.f32 %v508, %v592
        %v594 = vpop.f32.mrb[0].mxu0
        %v595 = vpop.f32.mrb[0].mxu0
        %v596 = vadd.f32 %v508, %v595
        %v597 = vpop.f32.mrb[0].mxu0
        %598 = vmatprep.mubr.bf16.mxu0 0
        %599 = vmatmul.mubr.bf16.gmra.mrb[0].mxu0 %v543
        %v600 = vpop.f32.mrb[0].mxu0
        %v601 = vadd.f32 %v508, %v600
        %v602 = vpop.f32.mrb[0].mxu0
        %v603 = vpop.f32.mrb[0].mxu0
        %v604 = vadd.f32 %v508, %v603
        %v605 = vpop.f32.mrb[0].mxu0
        %606 = vmatprep.mubr.bf16.mxu0 0
        %607 = vmatmul.mubr.bf16.gmra.mrb[0].mxu0 %v544
        %v608 = vpop.f32.mrb[0].mxu0
        %v609 = vadd.f32 %v508, %v608
        %v610 = vpop.f32.mrb[0].mxu0
        %v611 = vpop.f32.mrb[0].mxu0
        %v612 = vadd.f32 %v508, %v611
        %v613 = vpop.f32.mrb[0].mxu0
        %614 = vmatprep.mubr.bf16.mxu0 0
        %615 = vmatmul.mubr.bf16.gmra.mrb[0].mxu0 %v545
        %v616 = vpop.f32.mrb[0].mxu0
        %v617 = vadd.f32 %v508, %v616
        %v618 = vpop.f32.mrb[0].mxu0
        %v619 = vpop.f32.mrb[0].mxu0
        %v620 = vadd.f32 %v508, %v619
        %v621 = vpop.f32.mrb[0].mxu0
        %622 = vmatprep.mubr.bf16.mxu0 0
        %623 = vmatmul.mubr.bf16.gmra.mrb[0].mxu0 %v546
        %v624 = vpop.f32.mrb[0].mxu0
        %v625 = vadd.f32 %v508, %v624
        %v626 = vpop.f32.mrb[0].mxu0
        %v627 = vpop.f32.mrb[0].mxu0
        %v628 = vadd.f32 %v508, %v627
        %v629 = vpop.f32.mrb[0].mxu0
        %630 = vmatprep.mubr.bf16.mxu0 0
        %631 = vmatmul.mubr.bf16.gmra.mrb[0].mxu0 %v547
        %v632 = vpop.f32.mrb[0].mxu0
        %v633 = vadd.f32 %v508, %v632
        %v634 = vpop.f32.mrb[0].mxu0
        %v635 = vpop.f32.mrb[0].mxu0
        %v636 = vadd.f32 %v508, %v635
        %v637 = vpop.f32.mrb[0].mxu0
        %638 = vmatprep.mubr.bf16.mxu0 0
        %639 = vmatmul.mubr.bf16.gmra.mrb[0].mxu0 %v548
        %v640 = vpop.f32.mrb[0].mxu0
        %v641 = vadd.f32 %v508, %v640
        %v642 = vpop.f32.mrb[0].mxu0
        %v643 = vpop.f32.mrb[0].mxu0
        %v644 = vadd.f32 %v508, %v643
        %v645 = vpop.f32.mrb[0].mxu0
        %646 = vmatprep.mubr.bf16.mxu0 0
        %647 = vmatmul.mubr.bf16.gmra.mrb[0].mxu0 %v549
        %v648 = vpop.f32.mrb[0].mxu0
        %v649 = vadd.f32 %v508, %v648
        %v650 = vpop.f32.mrb[0].mxu0
        %v651 = vpop.f32.mrb[0].mxu0
        %v652 = vadd.f32 %v508, %v651
        %v653 = vpop.f32.mrb[0].mxu0
        %654 = vdwg.mxu0
        %p655 = scmp.lt.s32.totalorder %s20, 2
        %v656 = vmax.f32 %v593, 0.0
        %v657 = vmax.f32 %v596, 0.0
        %v658 = vmax.f32 %v601, 0.0
        %v659 = vmax.f32 %v604, 0.0
        %v660 = vmax.f32 %v609, 0.0
        %v661 = vmax.f32 %v612, 0.0
        %v662 = vmax.f32 %v617, 0.0
        %v663 = vmax.f32 %v620, 0.0
        %v664 = vmax.f32 %v625, 0.0
        %v665 = vmax.f32 %v628, 0.0
        %v666 = vmax.f32 %v633, 0.0
        %v667 = vmax.f32 %v636, 0.0
        %v668 = vmax.f32 %v641, 0.0
        %v669 = vmax.f32 %v644, 0.0
        %v670 = vmax.f32 %v649, 0.0
        %v671 = vmax.f32 %v652, 0.0
        %s672 = scalar_select %p655, 1, 0
        %v673 = vstv %s672
        %vm674 = vcmp.eq.s32.totalorder %v673, 1
        %v675 = vsel %vm674, %v656, %v593
        %v676 = vsel %vm674, %v657, %v596
        %v677 = vsel %vm674, %v658, %v601
        %v678 = vsel %vm674, %v659, %v604
        %v679 = vsel %vm674, %v660, %v609
        %v680 = vsel %vm674, %v661, %v612
        %v681 = vsel %vm674, %v662, %v617
        %v682 = vsel %vm674, %v663, %v620
        %v683 = vsel %vm674, %v664, %v625
        %v684 = vsel %vm674, %v665, %v628
        %v685 = vsel %vm674, %v666, %v633
        %v686 = vsel %vm674, %v667, %v636
        %v687 = vsel %vm674, %v668, %v641
        %v688 = vsel %vm674, %v669, %v644
        %v689 = vsel %vm674, %v670, %v649
        %v690 = vsel %vm674, %v671, %v652
        %691 = vst [vmem:[#allocation2] sm:$0xff] %v675
        %692 = vst [vmem:[#allocation2 + $0x8] sm:$0xff] %v676
        %693 = vst [vmem:[#allocation2 + $0x10] sm:$0xff] %v677
        %694 = vst [vmem:[#allocation2 + $0x18] sm:$0xff] %v678
        %695 = vst [vmem:[#allocation2 + $0x20] sm:$0xff] %v679
        %696 = vst [vmem:[#allocation2 + $0x28] sm:$0xff] %v680
        %697 = vst [vmem:[#allocation2 + $0x30] sm:$0xff] %v681
        %698 = vst [vmem:[#allocation2 + $0x38] sm:$0xff] %v682
        %699 = vst [vmem:[#allocation2 + $0x40] sm:$0xff] %v683
        %700 = vst [vmem:[#allocation2 + $0x48] sm:$0xff] %v684
        %701 = vst [vmem:[#allocation2 + $0x50] sm:$0xff] %v685
        %702 = vst [vmem:[#allocation2 + $0x58] sm:$0xff] %v686
        %703 = vst [vmem:[#allocation2 + $0x60] sm:$0xff] %v687
        %704 = vst [vmem:[#allocation2 + $0x68] sm:$0xff] %v688
        %705 = vst [vmem:[#allocation2 + $0x70] sm:$0xff] %v689
        %706 = vst [vmem:[#allocation2 + $0x78] sm:$0xff] %v690
        %707 = vst [vmem:[%s253] sm:$0xff] %v675
        %708 = vst [vmem:[%s253 + $0x8] sm:$0xff] %v676
        %709 = vst [vmem:[%s253 + $0x10] sm:$0xff] %v677
        %710 = vst [vmem:[%s253 + $0x18] sm:$0xff] %v678
        %711 = vst [vmem:[%s253 + $0x20] sm:$0xff] %v679
        %712 = vst [vmem:[%s253 + $0x28] sm:$0xff] %v680
        %713 = vst [vmem:[%s253 + $0x30] sm:$0xff] %v681
        %714 = vst [vmem:[%s253 + $0x38] sm:$0xff] %v682
        %715 = vst [vmem:[%s253 + $0x40] sm:$0xff] %v683
        %716 = vst [vmem:[%s253 + $0x48] sm:$0xff] %v684
        %717 = vst [vmem:[%s253 + $0x50] sm:$0xff] %v685
        %718 = vst [vmem:[%s253 + $0x58] sm:$0xff] %v686
        %719 = vst [vmem:[%s253 + $0x60] sm:$0xff] %v687
        %720 = vst [vmem:[%s253 + $0x68] sm:$0xff] %v688
        %721 = vst [vmem:[%s253 + $0x70] sm:$0xff] %v689
        %722 = vst [vmem:[%s253 + $0x78] sm:$0xff] %v690
        %s723 = sand.u32 %s122, 1
        %s724 = scalar_lea.sflag [#allocation5], %s723
        %s725 = sand.u32 %s122, 1
        %s726 = smul.addr %s725, 128
        %s727 = scalar_lea.vmem [#allocation9], %s726
        // Predicated region
        $region53: #{tpu_custom_call.1} parent=35 // pred_check
          %p728 = pneg %p132
        $region54: #{tpu_custom_call.1} parent=35 // pred_check_branch
          %730 = sbr.rel (%p728) target = $region56
        $region55: #{tpu_custom_call.1} parent=35 // pred_region
          %s732 = ssub.s32 2048, 2048
          %733 = vsyncadd %s724, %s732
          %s734 = smul.addr %s20, 16
          %s735 = smul.addr %s734, 128
          %s736 = scalar_lea.hbm %s4, %s735
          %s737 = sshll.u32 %s727, 4
          %s738 = int_to_ptr.vmem [resolvable:$true] %s737
          %743 = dma.vmem_to_hbm [thread:$0]  %s738, 2048, %s736, %s724, 128, 128, 8
        $region56: #{tpu_custom_call.1} parent=35 // pred_fallthru
          _
      $region36: #{tpu_custom_call.1} parent=5 // pred_fallthru
        _
      %p744 = scmp.le.s32.totalorder 2, %s15
      // Predicated region
      $region57: #{tpu_custom_call.1} parent=5 // pred_check
        %p745 = pneg %p744
      $region58: #{tpu_custom_call.1} parent=5 // pred_check_branch
        %747 = sbr.rel (%p745) target = $region60
      $region59: #{tpu_custom_call.1} parent=5 // pred_region
        %s748 = ssub.s32 %s15, 2
        // Predicated region
        $region61: #{tpu_custom_call.1} parent=59 // pred_check
          %p749 = pneg %p138
        $region62: #{tpu_custom_call.1} parent=59 // pred_check_branch
          %751 = sbr.rel (%p749) target = $region64
        $region63: #{tpu_custom_call.1} parent=59 // pred_region
          %s752 = sand.u32 %s123, 1
          %s753 = scalar_lea.sflag [#allocation5], %s752
          %s754 = sand.u32 %s123, 1
          %s755 = smul.addr %s754, 128
          %s756 = scalar_lea.vmem [#allocation9], %s755
          %757 = dma.done %s753, 2048
        $region64: #{tpu_custom_call.1} parent=59 // pred_fallthru
          _
      $region60: #{tpu_custom_call.1} parent=5 // pred_fallthru
        _
    $region6: #{tpu_custom_call.1} parent=1 // loop_footer
      %s19 = sadd.s32 1, %s15
    $region7: #{tpu_custom_call.1} parent=1 // loop_footer_branch
      %14 = sbr.rel target = $region3
    $region8: #{tpu_custom_call.1} parent=1 // loop_exit
      _
    %758 = vsyncpa [#allocation4], 1
    %s759 = scalar_lea.sflag [#allocation4], 1
    %760 = vsyncpa %s759, 1
    %761 = vsyncpa [#allocation7], 1
    %762 = vsyncpa [#allocation5], 1
    %s763 = scalar_lea.sflag [#allocation5], 1
    %764 = vsyncpa %s763, 1

</llo_original>
